<compile_context>
chip_gen: v5e
topology: v5e:2x2
jax: 0.10.0
libtpu: 0.0.40
codegen_flags: <defaults>
</compile_context>

<pallas_src>
import jax
import jax.numpy as jnp
from jax.experimental import pallas as pl
from jax.experimental.pallas import tpu as pltpu

DIM = 32  # channel dim; must be 32 to match make_interval()


def mask_predictor_kernel(x_ref, w_ref, b_ref, g_ref, o_ref):
    # x_ref: (C, TN) pixels-on-lanes activation tile
    # w_ref: (C_out, C_in) conv weight, bf16, resident in VMEM
    # b_ref: (C, 1) bias column, f32;  g_ref: (C, 1) interval grid column, f32
    # o_ref: (1, TN) lane-dense output tile
    xb = x_ref[...].astype(w_ref.dtype)                 # bf16 for the MXU
    y = jnp.dot(w_ref[...], xb, preferred_element_type=jnp.float32) + b_ref[...]
    # softmax over channels (axis 0), with the interval-weighted sum folded in:
    #   z = sum(e * g) / sum(e)   -> one EUP reciprocal per pixel
    m = jnp.max(y, axis=0, keepdims=True)               # (1, TN)
    e = jnp.exp(y - m)                                   # f32 elementwise
    num = jnp.sum(e * g_ref[...], axis=0, keepdims=True)
    den = jnp.sum(e, axis=0, keepdims=True)
    o_ref[...] = (num * pl.reciprocal(den, approx=True)).astype(o_ref.dtype)


def _pick_pixel_tile(hw, max_tn):
    """Pick a lane tile: the whole pixel axis, or a multiple of 128 dividing it."""
    if hw <= max_tn:
        return hw, hw                                   # single tile, no padding
    start = max_tn - (max_tn % 128)
    for t in range(start, 127, -128):
        if hw % t == 0:
            return t, hw                                # exact tiling, no padding
    # ragged fallback (rare): pad only the tail of the pixel axis
    tn = start
    return tn, pl.cdiv(hw, tn) * tn


def mask_predictor(x_nchw, weight, bias, grid_vals, *, max_tn=8192):
    """weight: (C_out, C_in) of the 1x1 conv (kernel dims squeezed); bias: (C_out,)."""
    b, c, h, w = x_nchw.shape
    assert c == DIM, "MaskPredictor forward only works with dim == 32"
    hw = h * w

    x3 = x_nchw.reshape(b, c, hw)          # free reshape: data stays NCHW in HBM
    tn, hw_pad = _pick_pixel_tile(hw, max_tn)
    if hw_pad != hw:
        # TODO(synk): ragged pixel tail; pads last axis only (rare path).
        x3 = jnp.pad(x3, ((0, 0), (0, 0), (0, hw_pad - hw)))

    w_bf = weight.astype(jnp.bfloat16)     # (C_out, C_in), tiny, resident in VMEM
    b2 = bias.reshape(c, 1).astype(jnp.float32)
    g2 = grid_vals.reshape(c, 1).astype(jnp.float32)

    out = pl.pallas_call(
        mask_predictor_kernel,
        out_shape=jax.ShapeDtypeStruct((b, 1, hw_pad), x_nchw.dtype),
        grid=(b, hw_pad // tn),
        in_specs=[
            pl.BlockSpec((None, c, tn), lambda bi, j: (bi, 0, j)),  # activation tile
            pl.BlockSpec((c, c), lambda bi, j: (0, 0)),             # conv weight
            pl.BlockSpec((c, 1), lambda bi, j: (0, 0)),             # bias column
            pl.BlockSpec((c, 1), lambda bi, j: (0, 0)),             # interval grid
        ],
        out_specs=pl.BlockSpec((None, 1, tn), lambda bi, j: (bi, 0, j)),
        compiler_params=pltpu.CompilerParams(
            dimension_semantics=("parallel", "parallel")),
    )(x3, w_bf, b2, g2)

    if hw_pad != hw:
        out = out[:, :, :hw]
    return out.reshape(b, 1, h, w)         # free reshape back to NCHW (B, 1, H, W)


def make_interval(start=0.01, end=1.0, depth=32):
    return jnp.linspace(start, end, depth, dtype=jnp.float32)


def reference(x_nchw, weight, bias, grid_vals):
    # pure-JAX f32 reference for the same forward pass
    y = jnp.einsum('bchw,oc->bohw', x_nchw, weight) + bias[None, :, None, None]
    z = jax.nn.softmax(y, axis=1) * grid_vals[None, :, None, None]
    return jnp.sum(z, axis=1, keepdims=True)


if __name__ == "__main__":
    key = jax.random.PRNGKey(0)
    k_x, k_w, k_b = jax.random.split(key, 3)

    B, C, H, W = 2, DIM, 16, 16
    x = jax.random.normal(k_x, (B, C, H, W), dtype=jnp.float32)

    # deterministic synthetic parameters for Conv2d(32, 32, 1)
    fan_in = C  # 1x1 kernel
    bound = 1.0 / (fan_in ** 0.5)
    weight = jax.random.uniform(k_w, (C, C), jnp.float32, -bound, bound)  # (C_out, C_in)
    bias = jax.random.uniform(k_b, (C,), jnp.float32, -bound, bound)
    grid_vals = make_interval()

    out = jax.block_until_ready(mask_predictor(x, weight, bias, grid_vals))
    ref = reference(x, weight, bias, grid_vals)

    assert out.shape == (B, 1, H, W), out.shape
    # bf16 MXU inputs + approx reciprocal -> relaxed tolerance vs the f32 reference
    assert jnp.allclose(out, ref, atol=2e-2, rtol=2e-2), float(jnp.max(jnp.abs(out - ref)))

    print("KERNEL_OK")
</pallas_src>

<mosaic_0001>
module attributes {stable_mosaic.version = 11 : i64} {
  func.func @mask_predictor_kernel(%arg0: i32, %arg1: i32, %arg2: memref<1x32x256xf32, #tpu.memory_space<vmem>>, %arg3: memref<32x32xbf16, #tpu.memory_space<vmem>>, %arg4: memref<32x1xf32, #tpu.memory_space<vmem>>, %arg5: memref<32x1xf32, #tpu.memory_space<vmem>>, %arg6: memref<1x1x256xf32, #tpu.memory_space<vmem>>) attributes {dimension_semantics = [#tpu.dimension_semantics<parallel>, #tpu.dimension_semantics<parallel>], iteration_bounds = array<i64: 2, 1>, scalar_prefetch = 0 : i64, scratch_operands = 0 : i64, tpu.core_type = #tpu.core_type<tc>, window_params = [{transform_indices = @transform_0, window_bounds = array<i64: 1, 32, 256>}, {pipeline_mode = #tpu.pipeline_mode<synchronous>, transform_indices = @transform_1, window_bounds = array<i64: 32, 32>}, {pipeline_mode = #tpu.pipeline_mode<synchronous>, transform_indices = @transform_2, window_bounds = array<i64: 32, 1>}, {pipeline_mode = #tpu.pipeline_mode<synchronous>, transform_indices = @transform_3, window_bounds = array<i64: 32, 1>}, {transform_indices = @transform_4, window_bounds = array<i64: 1, 1, 256>}]} {
    %c0 = arith.constant 0 : index
    %c0_0 = arith.constant 0 : index
    %c0_1 = arith.constant 0 : index
    %0 = vector.load %arg2[%c0, %c0_0, %c0_1] : memref<1x32x256xf32, #tpu.memory_space<vmem>>, vector<1x32x256xf32>
    %1 = vector.shape_cast %0 : vector<1x32x256xf32> to vector<32x256xf32>
    %2 = arith.truncf %1 : vector<32x256xf32> to vector<32x256xbf16>
    %c0_2 = arith.constant 0 : index
    %c0_3 = arith.constant 0 : index
    %3 = vector.load %arg3[%c0_2, %c0_3] : memref<32x32xbf16, #tpu.memory_space<vmem>>, vector<32x32xbf16>
    %cst = arith.constant dense<0.000000e+00> : vector<32x256xf32>
    %4 = tpu.matmul %3, %2, %cst {dimension_numbers = #tpu.dot_dimension_numbers<[1], [0], [0], [1], [0, 0, 1, 1], [], []>} : vector<32x32xbf16>, vector<32x256xbf16>, vector<32x256xf32> -> vector<32x256xf32>
    %c0_4 = arith.constant 0 : index
    %c0_5 = arith.constant 0 : index
    %5 = vector.load %arg4[%c0_4, %c0_5] : memref<32x1xf32, #tpu.memory_space<vmem>>, vector<32x1xf32>
    %6 = vector.broadcast %5 : vector<32x1xf32> to vector<32x256xf32>
    %7 = arith.addf %4, %6 : vector<32x256xf32>
    %cst_6 = arith.constant dense<0xFF800000> : vector<256xf32>
    %8 = vector.multi_reduction <maximumf>, %7, %cst_6 [0] : vector<32x256xf32> to vector<256xf32>
    %9 = vector.shape_cast %8 : vector<256xf32> to vector<1x256xf32>
    %10 = vector.broadcast %9 : vector<1x256xf32> to vector<32x256xf32>
    %11 = arith.subf %7, %10 : vector<32x256xf32>
    %12 = math.exp %11 : vector<32x256xf32>
    %c0_7 = arith.constant 0 : index
    %c0_8 = arith.constant 0 : index
    %13 = vector.load %arg5[%c0_7, %c0_8] : memref<32x1xf32, #tpu.memory_space<vmem>>, vector<32x1xf32>
    %14 = vector.broadcast %13 : vector<32x1xf32> to vector<32x256xf32>
    %15 = arith.mulf %12, %14 : vector<32x256xf32>
    %cst_9 = arith.constant dense<0.000000e+00> : vector<256xf32>
    %16 = vector.multi_reduction <add>, %15, %cst_9 [0] : vector<32x256xf32> to vector<256xf32>
    %17 = vector.shape_cast %16 : vector<256xf32> to vector<1x256xf32>
    %cst_10 = arith.constant dense<0.000000e+00> : vector<256xf32>
    %18 = vector.multi_reduction <add>, %12, %cst_10 [0] : vector<32x256xf32> to vector<256xf32>
    %19 = vector.shape_cast %18 : vector<256xf32> to vector<1x256xf32>
    %20 = tpu.reciprocal %19 {approx = true} : vector<1x256xf32> -> vector<1x256xf32>
    %21 = arith.mulf %17, %20 : vector<1x256xf32>
    %c0_11 = arith.constant 0 : index
    %c0_12 = arith.constant 0 : index
    %c0_13 = arith.constant 0 : index
    %22 = vector.load %arg6[%c0_11, %c0_12, %c0_13] : memref<1x1x256xf32, #tpu.memory_space<vmem>>, vector<1x1x256xf32>
    %23 = vector.shape_cast %22 : vector<1x1x256xf32> to vector<1x256xf32>
    %24 = vector.shape_cast %21 : vector<1x256xf32> to vector<1x1x256xf32>
    tpu.vector_store %arg6[%c0_11, %c0_12, %c0_13], %24 {strides = array<i32>} : memref<1x1x256xf32, #tpu.memory_space<vmem>>, vector<1x1x256xf32>,
    return
  }
  func.func @transform_0(%arg0: i32, %arg1: i32) -> (i32, i32, i32) {
    %c0_i32 = arith.constant 0 : i32
    %c0_i32_0 = arith.constant 0 : i32
    return %arg0, %c0_i32, %arg1 : i32, i32, i32
  }
  func.func @transform_1(%arg0: i32, %arg1: i32) -> (i32, i32) {
    %c0_i32 = arith.constant 0 : i32
    %c0_i32_0 = arith.constant 0 : i32
    %c0_i32_1 = arith.constant 0 : i32
    return %c0_i32, %c0_i32_0 : i32, i32
  }
  func.func @transform_2(%arg0: i32, %arg1: i32) -> (i32, i32) {
    %c0_i32 = arith.constant 0 : i32
    %c0_i32_0 = arith.constant 0 : i32
    %c0_i32_1 = arith.constant 0 : i32
    return %c0_i32, %c0_i32_0 : i32, i32
  }
  func.func @transform_3(%arg0: i32, %arg1: i32) -> (i32, i32) {
    %c0_i32 = arith.constant 0 : i32
    %c0_i32_0 = arith.constant 0 : i32
    %c0_i32_1 = arith.constant 0 : i32
    return %c0_i32, %c0_i32_0 : i32, i32
  }
  func.func @transform_4(%arg0: i32, %arg1: i32) -> (i32, i32, i32) {
    %c0_i32 = arith.constant 0 : i32
    %c0_i32_0 = arith.constant 0 : i32
    return %arg0, %c0_i32, %arg1 : i32, i32, i32
  }
}

</mosaic_0001>

<llo_original>
// kernel: tpu_custom_call.1
$region0: #{tpu_custom_call.1}
  #allocation0 [shape = 'u32[]', space=smem, size = 0x4, offset = 0x4, fixed_abs, tag = 'smem constant byte address 0x4 - core index']
  #allocation1 [shape = 'u32[72,128]{1,0:T(1,128)}', space=vmem, size = 0x9000, scoped, tag = 'internal scratch']
  %s0 = inlined_call_operand.hbm [shape: f32[2,32,256], index: 0, kind: input, shape index: {}]
  %s1 = inlined_call_operand.vmem [shape: bf16[32,32], index: 1, kind: input, shape index: {}]
  %s2 = inlined_call_operand.vmem [shape: f32[32,1], index: 2, kind: input, shape index: {}]
  %s3 = inlined_call_operand.vmem [shape: f32[32,1], index: 3, kind: input, shape index: {}]
  %s4 = inlined_call_operand.hbm [shape: f32[2,1,256], index: 4, kind: output, shape index: {}]
  %s5 = sld [smem:[#allocation0]]
  $region53: #{tpu_custom_call.1} parent=0
    _
  %s7 = ssub.s32 1, %s5
  %s8 = scalar_select 0, %s7, %s5
  $region1: #{tpu_custom_call.1} parent=0
    #allocation2 [shape = 'u8[65536]{0}', space=vmem, size = 0x10000, scoped, tag = 'input window, operand 0']
    #allocation3 [shape = 's32[2]{0}', space=sflag, size = 0x8, scoped, tag = 'scoped memory for tpu_custom_call.1']
    #allocation4 [shape = 's32[2]{0}', space=sflag, size = 0x8, scoped, tag = 'scoped memory for tpu_custom_call.1']
    #allocation5 [shape = 'u8[2048]{0}', space=vmem, size = 0x800, scoped, tag = 'output window, operand 0']
    %9 = vsyncpa [#allocation3], 0
    %s10 = scalar_lea.sflag [#allocation3], 1
    %11 = vsyncpa %s10, 0
    %12 = vsyncpa [#allocation4], 0
    %s13 = scalar_lea.sflag [#allocation4], 1
    %14 = vsyncpa %s13, 0
    loop: start=0, step=1, limit=4
    $region2: #{tpu_custom_call.1} parent=1 // loop_pre_header
      _
    $region3: #{tpu_custom_call.1} parent=1 // loop_header
      %s16 = sphi 0, %s20
      %p17 = scmp.ge.s32.totalorder %s16, 4
      %s23 = sphi 0, %s35
      %s24 = sphi 0, %s31
      %s25 = sphi 0, %s23
      %s26 = sphi 0, %s24
      %s27 = sphi 0, %s25
      %s28 = sphi 0, %s26
      %s40 = sphi 0, %s42
      %s43 = sphi 0, %s40
      %s44 = sphi 0, %s43
      %s60 = sphi 0, %s44
      %s64 = sphi 0, %s64
      %s66 = sphi 0, %s64
      %s67 = sphi 0, %s66
      %s81 = sphi 0, %s67
      %s85 = sphi 0, %s85
      %s87 = sphi 0, %s85
      %s88 = sphi 0, %s87
      %s102 = sphi 0, %s88
      %s106 = sphi 0, %s106
      %s108 = sphi 0, %s106
      %s109 = sphi 0, %s108
      %s123 = sphi 0, %s109
      %s131 = sphi 0, %s133
      %s134 = sphi 0, %s131
      %s135 = sphi 0, %s134
      %s151 = sphi 0, %s135
    $region4: #{tpu_custom_call.1} parent=1 // loop_header_branch
      %19 = sbr.rel (%p17) target = $region8
    $region5: #{tpu_custom_call.1} parent=1 // loop_body
      %s21 = ssub.s32 %s16, 1
      %s22 = ssub.s32 %s16, 2
      %s29 = sadd.s32 1, %s24
      %p30 = scmp.ge.s32.totalorder %s29, 1
      %s31 = scalar_select %p30, 0, %s29
      %s32 = sadd.s32 1, %s23
      %s33 = scalar_select %p30, %s32, %s23
      %p34 = scmp.ge.s32.totalorder %s33, 2
      %s35 = scalar_select %p34, 0, %s33
      %s36 = ssub.s32 %s23, %s35
      %s37 = ssub.s32 %s24, %s31
      %s38 = sor.u32 %s36, %s37
      %p39 = scmp.eq.s32.totalorder %s38, 0
      %s41 = sadd.s32 %s40, 1
      %s42 = scalar_select %p39, %s40, %s41
      %p45 = pneg %p39
      %p46 = scmp.eq.s32.totalorder %s16, 1
      %p47 = por %p45, %p46
      %p48 = scmp.ne.s32.totalorder %s40, %s43
      %p49 = scmp.eq.s32.totalorder %s16, 0
      %p50 = por %p48, %p49
      %p51 = scmp.ne.s32.totalorder %s40, %s43
      %p52 = scmp.eq.s32.totalorder %s21, 1
      %p53 = por %p51, %p52
      %p54 = scmp.ne.s32.totalorder %s43, %s44
      %p55 = scmp.eq.s32.totalorder %s21, 0
      %p56 = por %p54, %p55
      %p57 = scmp.ne.s32.totalorder %s43, %s44
      %p58 = scmp.eq.s32.totalorder %s22, 1
      %p59 = por %p57, %p58
      %p61 = scmp.ne.s32.totalorder %s44, %s60
      %p62 = scmp.eq.s32.totalorder %s22, 0
      %p63 = por %p61, %p62
      %s65 = sadd.s32 %s64, 1
      %p68 = scmp.eq.s32.totalorder %s16, 1
      %p69 = scmp.ne.s32.totalorder %s64, %s66
      %p70 = scmp.eq.s32.totalorder %s16, 0
      %p71 = por %p69, %p70
      %p72 = scmp.ne.s32.totalorder %s64, %s66
      %p73 = scmp.eq.s32.totalorder %s21, 1
      %p74 = por %p72, %p73
      %p75 = scmp.ne.s32.totalorder %s66, %s67
      %p76 = scmp.eq.s32.totalorder %s21, 0
      %p77 = por %p75, %p76
      %p78 = scmp.ne.s32.totalorder %s66, %s67
      %p79 = scmp.eq.s32.totalorder %s22, 1
      %p80 = por %p78, %p79
      %p82 = scmp.ne.s32.totalorder %s67, %s81
      %p83 = scmp.eq.s32.totalorder %s22, 0
      %p84 = por %p82, %p83
      %s86 = sadd.s32 %s85, 1
      %p89 = scmp.eq.s32.totalorder %s16, 1
      %p90 = scmp.ne.s32.totalorder %s85, %s87
      %p91 = scmp.eq.s32.totalorder %s16, 0
      %p92 = por %p90, %p91
      %p93 = scmp.ne.s32.totalorder %s85, %s87
      %p94 = scmp.eq.s32.totalorder %s21, 1
      %p95 = por %p93, %p94
      %p96 = scmp.ne.s32.totalorder %s87, %s88
      %p97 = scmp.eq.s32.totalorder %s21, 0
      %p98 = por %p96, %p97
      %p99 = scmp.ne.s32.totalorder %s87, %s88
      %p100 = scmp.eq.s32.totalorder %s22, 1
      %p101 = por %p99, %p100
      %p103 = scmp.ne.s32.totalorder %s88, %s102
      %p104 = scmp.eq.s32.totalorder %s22, 0
      %p105 = por %p103, %p104
      %s107 = sadd.s32 %s106, 1
      %p110 = scmp.eq.s32.totalorder %s16, 1
      %p111 = scmp.ne.s32.totalorder %s106, %s108
      %p112 = scmp.eq.s32.totalorder %s16, 0
      %p113 = por %p111, %p112
      %p114 = scmp.ne.s32.totalorder %s106, %s108
      %p115 = scmp.eq.s32.totalorder %s21, 1
      %p116 = por %p114, %p115
      %p117 = scmp.ne.s32.totalorder %s108, %s109
      %p118 = scmp.eq.s32.totalorder %s21, 0
      %p119 = por %p117, %p118
      %p120 = scmp.ne.s32.totalorder %s108, %s109
      %p121 = scmp.eq.s32.totalorder %s22, 1
      %p122 = por %p120, %p121
      %p124 = scmp.ne.s32.totalorder %s109, %s123
      %p125 = scmp.eq.s32.totalorder %s22, 0
      %p126 = por %p124, %p125
      %s127 = ssub.s32 %s23, %s35
      %s128 = ssub.s32 %s24, %s31
      %s129 = sor.u32 %s127, %s128
      %p130 = scmp.eq.s32.totalorder %s129, 0
      %s132 = sadd.s32 %s131, 1
      %s133 = scalar_select %p130, %s131, %s132
      %p136 = pneg %p130
      %p137 = scmp.eq.s32.totalorder %s16, 1
      %p138 = por %p136, %p137
      %p139 = scmp.ne.s32.totalorder %s131, %s134
      %p140 = scmp.eq.s32.totalorder %s16, 0
      %p141 = por %p139, %p140
      %p142 = scmp.ne.s32.totalorder %s131, %s134
      %p143 = scmp.eq.s32.totalorder %s21, 1
      %p144 = por %p142, %p143
      %p145 = scmp.ne.s32.totalorder %s134, %s135
      %p146 = scmp.eq.s32.totalorder %s21, 0
      %p147 = por %p145, %p146
      %p148 = scmp.ne.s32.totalorder %s134, %s135
      %p149 = scmp.eq.s32.totalorder %s22, 1
      %p150 = por %p148, %p149
      %p152 = scmp.ne.s32.totalorder %s135, %s151
      %p153 = scmp.eq.s32.totalorder %s22, 0
      %p154 = por %p152, %p153
      %p155 = scmp.le.s32.totalorder 1, %s16
      %p156 = scmp.lt.s32.totalorder %s16, 3
      %p157 = pnand %p155, %p156
      %p158 = pneg %p157
      // Predicated region
      $region9: #{tpu_custom_call.1} parent=5 // pred_check
        _
      $region10: #{tpu_custom_call.1} parent=5 // pred_check_branch
        %160 = sbr.rel (%p157) target = $region12
      $region11: #{tpu_custom_call.1} parent=5 // pred_region
        %s161 = ssub.s32 %s16, 1
        // Predicated region
        $region13: #{tpu_custom_call.1} parent=11 // pred_check
          %p162 = pneg %p77
        $region14: #{tpu_custom_call.1} parent=11 // pred_check_branch
          %164 = sbr.rel (%p162) target = $region16
        $region15: #{tpu_custom_call.1} parent=11 // pred_region
          _
        $region16: #{tpu_custom_call.1} parent=11 // pred_fallthru
          _
        // Predicated region
        $region17: #{tpu_custom_call.1} parent=11 // pred_check
          %p165 = pneg %p98
        $region18: #{tpu_custom_call.1} parent=11 // pred_check_branch
          %167 = sbr.rel (%p165) target = $region20
        $region19: #{tpu_custom_call.1} parent=11 // pred_region
          _
        $region20: #{tpu_custom_call.1} parent=11 // pred_fallthru
          _
        // Predicated region
        $region21: #{tpu_custom_call.1} parent=11 // pred_check
          %p168 = pneg %p119
        $region22: #{tpu_custom_call.1} parent=11 // pred_check_branch
          %170 = sbr.rel (%p168) target = $region24
        $region23: #{tpu_custom_call.1} parent=11 // pred_region
          _
        $region24: #{tpu_custom_call.1} parent=11 // pred_fallthru
          _
      $region12: #{tpu_custom_call.1} parent=5 // pred_fallthru
        _
      %p171 = scmp.lt.s32.totalorder %s16, 2
      // Predicated region
      $region25: #{tpu_custom_call.1} parent=5 // pred_check
        %p172 = pneg %p171
      $region26: #{tpu_custom_call.1} parent=5 // pred_check_branch
        %174 = sbr.rel (%p172) target = $region28
      $region27: #{tpu_custom_call.1} parent=5 // pred_region
        // Predicated region
        $region29: #{tpu_custom_call.1} parent=27 // pred_check
          %p175 = pneg %p50
        $region30: #{tpu_custom_call.1} parent=27 // pred_check_branch
          %177 = sbr.rel (%p175) target = $region32
        $region31: #{tpu_custom_call.1} parent=27 // pred_region
          %s178 = sand.u32 %s40, 1
          %s179 = scalar_lea.sflag [#allocation3], %s178
          %s180 = sand.u32 %s40, 1
          %s181 = smul.addr %s180, 64
          %s182 = scalar_lea.vmem [#allocation2], %s181
          %s183 = smul.u32 2, %s24
          %185 = vsyncadd %s179, 0
          %s186 = smul.addr %s23, 8
          %s187 = sadd.s32 %s183, %s186
          %s188 = smul.addr %s187, 8
          %s189 = scalar_lea.hbm %s0, %s188
          %s190 = sshll.u32 %s189, 4
          %s191 = int_to_ptr.hbm [resolvable:$true] %s190
          %s192 = sshll.u32 %s182, 4
          %s193 = int_to_ptr.vmem [resolvable:$true] %s192
          %198 = dma.hbm_to_vmem [thread:$0]  %s191, 1024, %s193, %s179, 256, 256, 16
        $region32: #{tpu_custom_call.1} parent=27 // pred_fallthru
          _
      $region28: #{tpu_custom_call.1} parent=5 // pred_fallthru
        _
      %p199 = scmp.le.s32.totalorder 1, %s16
      %p200 = scmp.lt.s32.totalorder %s16, 3
      %p201 = pnand %p199, %p200
      %p202 = pneg %p201
      // Predicated region
      $region33: #{tpu_custom_call.1} parent=5 // pred_check
        _
      $region34: #{tpu_custom_call.1} parent=5 // pred_check_branch
        %204 = sbr.rel (%p201) target = $region36
      $region35: #{tpu_custom_call.1} parent=5 // pred_region
        %s205 = ssub.s32 %s16, 1
        %s206 = sand.u32 %s43, 1
        %s207 = scalar_lea.sflag [#allocation3], %s206
        %s208 = sand.u32 %s43, 1
        %s209 = smul.addr %s208, 64
        %s210 = scalar_lea.vmem [#allocation2], %s209
        // Predicated region
        $region37: #{tpu_custom_call.1} parent=35 // pred_check
          %p211 = pneg %p56
        $region38: #{tpu_custom_call.1} parent=35 // pred_check_branch
          %213 = sbr.rel (%p211) target = $region40
        $region39: #{tpu_custom_call.1} parent=35 // pred_region
          %215 = dma.done %s207, 1024
        $region40: #{tpu_custom_call.1} parent=35 // pred_fallthru
          _
        %s216 = sand.u32 %s43, 1
        %s217 = scalar_lea.sflag [#allocation3], %s216
        %s218 = sand.u32 %s43, 1
        %s219 = smul.addr %s218, 64
        %s220 = scalar_lea.vmem [#allocation2], %s219
        %p221 = pneg %p56
        %p222 = pneg %p53
        %p223 = pneg %p77
        %p224 = pneg %p74
        %p225 = pneg %p98
        %p226 = pneg %p95
        %p227 = pneg %p119
        %p228 = pneg %p116
        %p229 = pneg %p147
        %p230 = pneg %p144
        %s231 = sand.u32 %s134, 1
        %s232 = scalar_lea.sflag [#allocation4], %s231
        %s233 = sand.u32 %s134, 1
        %s234 = smul.addr %s233, 2
        %s235 = scalar_lea.vmem [#allocation5], %s234
        %s236 = smul.u32 2, %s26
        %s237 = smul.u32 2, %s26
        %v239 = vld [vmem:[%s210] sm:$0xff]
        %v240 = vld [vmem:[%s210 + $0x8] sm:$0xff]
        %v241 = vld [vmem:[%s210 + $0x10] sm:$0xff]
        %v242 = vld [vmem:[%s210 + $0x18] sm:$0xff]
        %v243 = vld [vmem:[%s210 + $0x20] sm:$0xff]
        %v244 = vld [vmem:[%s210 + $0x28] sm:$0xff]
        %v245 = vld [vmem:[%s210 + $0x30] sm:$0xff]
        %v246 = vld [vmem:[%s210 + $0x38] sm:$0xff]
        %v247 = vpack.c.bf16 %v241, %v239
        %v248 = vpack.c.bf16 %v242, %v240
        %v249 = vpack.c.bf16 %v245, %v243
        %v250 = vpack.c.bf16 %v246, %v244
        %v251 = vld [vmem:[%s1] sm:$0xf]
        %v252 = vld [vmem:[%s1 + $0x4] sm:$0xf]
        %v253 = vld [vmem:[%s1 + $0x8] sm:$0xf]
        %v254 = vld [vmem:[%s1 + $0xc] sm:$0xf]
        %v255 = vld [vmem:[%s2] sm:$0xff]
        %v256 = vld [vmem:[%s2 + $0x8] sm:$0xff]
        %v257 = vld [vmem:[%s2 + $0x10] sm:$0xff]
        %v258 = vld [vmem:[%s2 + $0x18] sm:$0xff]
        %260 = vset.pattern.permute.xlu0 0
        %261 = vperm.xlu0 %260, %v255
        %v262 = vpop.permute.xlu0 %261
        %265 = vset.pattern.permute.xlu0 0
        %266 = vperm.xlu0 %265, %v256
        %v267 = vpop.permute.xlu0 %266
        %270 = vset.pattern.permute.xlu0 0
        %271 = vperm.xlu0 %270, %v257
        %v272 = vpop.permute.xlu0 %271
        %275 = vset.pattern.permute.xlu0 0
        %276 = vperm.xlu0 %275, %v258
        %v277 = vpop.permute.xlu0 %276
        %v283 = vunpack.c.l.b16 %v251
        %v284 = vunpack.c.l.b16 %v252
        %v285 = vunpack.c.l.b16 %v253
        %v286 = vunpack.c.l.b16 %v254
        %v287 = vpack.c.b16 %v284, %v283
        %v288 = vpack.c.b16 %v286, %v285
        %vm289 = vcmask 261120
        %v291 = vsel %vm289, %v287, 0
        %v294 = vsel %vm289, %v288, 0
        %296 = vmatpush.bf16.msra.mxu0 0
        %297 = vmatpush.bf16.msra.mxu0 0
        %298 = vmatpush.bf16.msra.mxu0 0
        %299 = vmatpush.bf16.msra.mxu0 0
        %300 = vmatpush.bf16.msra.mxu0 0
        %301 = vmatpush.bf16.msra.mxu0 0
        %302 = vmatpush.bf16.msra.mxu0 %v249
        %303 = vmatpush.bf16.msra.mxu0 %v247
        %304 = vmatmul.bf16.gmra.mxu0 %v291
        %v305 = vpop.f32.mrf.mxu0
        %v306 = vadd.f32 %v262, %v305
        %v307 = vpop.f32.mrf.mxu0
        %v308 = vadd.f32 %v267, %v307
        %309 = vmatmul.bf16.gmra.mxu0 %v294
        %v310 = vpop.f32.mrf.mxu0
        %v311 = vadd.f32 %v272, %v310
        %v312 = vpop.f32.mrf.mxu0
        %v313 = vadd.f32 %v277, %v312
        %314 = vdwg.mxu0
        %315 = vmatpush.bf16.msra.mxu0 0
        %316 = vmatpush.bf16.msra.mxu0 0
        %317 = vmatpush.bf16.msra.mxu0 0
        %318 = vmatpush.bf16.msra.mxu0 0
        %319 = vmatpush.bf16.msra.mxu0 0
        %320 = vmatpush.bf16.msra.mxu0 0
        %321 = vmatpush.bf16.msra.mxu0 %v250
        %322 = vmatpush.bf16.msra.mxu0 %v248
        %323 = vmatmul.bf16.gmra.mxu0 %v291
        %v324 = vpop.f32.mrf.mxu0
        %v325 = vadd.f32 %v262, %v324
        %v326 = vpop.f32.mrf.mxu0
        %v327 = vadd.f32 %v267, %v326
        %328 = vmatmul.bf16.gmra.mxu0 %v294
        %v329 = vpop.f32.mrf.mxu0
        %v330 = vadd.f32 %v272, %v329
        %v331 = vpop.f32.mrf.mxu0
        %v332 = vadd.f32 %v277, %v331
        %333 = vdwg.mxu0
        %v334 = vmax.f32 %v306, %v311
        %v335 = vmax.f32 %v308, %v313
        %v336 = vmax.f32 %v334, %v335
        %v337 = vrot.slane %v336, 4
        %v338 = vmax.f32 %v336, %v337
        %v339 = vrot.slane %v338, 2
        %v340 = vmax.f32 %v338, %v339
        %v341 = vrot.slane %v340, 1
        %v342 = vmax.f32 %v340, %v341
        %v343 = vmax.f32 %v325, %v330
        %v344 = vmax.f32 %v327, %v332
        %v345 = vmax.f32 %v343, %v344
        %v346 = vrot.slane %v345, 4
        %v347 = vmax.f32 %v345, %v346
        %v348 = vrot.slane %v347, 2
        %v349 = vmax.f32 %v347, %v348
        %v350 = vrot.slane %v349, 1
        %v351 = vmax.f32 %v349, %v350
        %v352 = vsub.f32 %v306, %v342
        %v353 = vsub.f32 %v325, %v351
        %v354 = vsub.f32 %v308, %v342
        %v355 = vsub.f32 %v327, %v351
        %v356 = vsub.f32 %v311, %v342
        %v357 = vsub.f32 %v330, %v351
        %v358 = vsub.f32 %v313, %v342
        %v359 = vsub.f32 %v332, %v351
        %v360 = vmul.f32 %v352, 1.442695
        %v361 = vpow.pop %v360
        %v362 = vmul.f32 %v353, 1.442695
        %v363 = vpow.pop %v362
        %v364 = vmul.f32 %v354, 1.442695
        %v365 = vpow.pop %v364
        %v366 = vmul.f32 %v355, 1.442695
        %v367 = vpow.pop %v366
        %v368 = vmul.f32 %v356, 1.442695
        %v369 = vpow.pop %v368
        %v370 = vmul.f32 %v357, 1.442695
        %v371 = vpow.pop %v370
        %v372 = vmul.f32 %v358, 1.442695
        %v373 = vpow.pop %v372
        %v374 = vmul.f32 %v359, 1.442695
        %v375 = vpow.pop %v374
        %v376 = vld [vmem:[%s3] sm:$0xff]
        %v377 = vld [vmem:[%s3 + $0x8] sm:$0xff]
        %v378 = vld [vmem:[%s3 + $0x10] sm:$0xff]
        %v379 = vld [vmem:[%s3 + $0x18] sm:$0xff]
        %381 = vset.pattern.permute.xlu0 0
        %382 = vperm.xlu0 %381, %v376
        %v383 = vpop.permute.xlu0 %382
        %386 = vset.pattern.permute.xlu0 0
        %387 = vperm.xlu0 %386, %v377
        %v388 = vpop.permute.xlu0 %387
        %391 = vset.pattern.permute.xlu0 0
        %392 = vperm.xlu0 %391, %v378
        %v393 = vpop.permute.xlu0 %392
        %396 = vset.pattern.permute.xlu0 0
        %397 = vperm.xlu0 %396, %v379
        %v398 = vpop.permute.xlu0 %397
        %v400 = vmul.f32 %v361, %v383
        %v401 = vmul.f32 %v363, %v383
        %v402 = vmul.f32 %v365, %v388
        %v403 = vmul.f32 %v367, %v388
        %v404 = vmul.f32 %v369, %v393
        %v405 = vmul.f32 %v371, %v393
        %v406 = vmul.f32 %v373, %v398
        %v407 = vmul.f32 %v375, %v398
        %v408 = vadd.f32 %v400, %v402
        %v409 = vadd.f32 %v408, %v404
        %v410 = vadd.f32 %v409, %v406
        %v411 = vrot.slane %v410, 4
        %v412 = vadd.f32 %v410, %v411
        %v413 = vrot.slane %v412, 2
        %v414 = vadd.f32 %v412, %v413
        %v415 = vrot.slane %v414, 1
        %v416 = vadd.f32 %v414, %v415
        %v417 = vadd.f32 %v401, %v403
        %v418 = vadd.f32 %v417, %v405
        %v419 = vadd.f32 %v418, %v407
        %v420 = vrot.slane %v419, 4
        %v421 = vadd.f32 %v419, %v420
        %v422 = vrot.slane %v421, 2
        %v423 = vadd.f32 %v421, %v422
        %v424 = vrot.slane %v423, 1
        %v425 = vadd.f32 %v423, %v424
        %v426 = vadd.f32 %v361, %v365
        %v427 = vadd.f32 %v426, %v369
        %v428 = vadd.f32 %v427, %v373
        %v429 = vrot.slane %v428, 4
        %v430 = vadd.f32 %v428, %v429
        %v431 = vrot.slane %v430, 2
        %v432 = vadd.f32 %v430, %v431
        %v433 = vrot.slane %v432, 1
        %v434 = vadd.f32 %v432, %v433
        %v435 = vadd.f32 %v363, %v367
        %v436 = vadd.f32 %v435, %v371
        %v437 = vadd.f32 %v436, %v375
        %v438 = vrot.slane %v437, 4
        %v439 = vadd.f32 %v437, %v438
        %v440 = vrot.slane %v439, 2
        %v441 = vadd.f32 %v439, %v440
        %v442 = vrot.slane %v441, 1
        %v443 = vadd.f32 %v441, %v442
        %v444 = vrcp.pop %v434
        %v445 = vrcp.pop %v443
        %v446 = vmul.f32 %v416, %v444
        %v447 = vmul.f32 %v425, %v445
        %v450 = vrot.slane %v447, 7
        %vm451 = vcmask 1040384
        %v452 = vsel %vm451, %v446, %v450
        %v454 = vlaneseq
        %vm455 = vcmp.ge.s32.totalorder %v454, 0
        %vm456 = vcmp.lt.s32.totalorder %v454, 256
        %vm457 = vmand %vm455, %vm456
        %458 = vst.msk [vmem:[%s235] sm:$0x3] %vm457, %v452
        %s459 = sand.u32 %s134, 1
        %s460 = scalar_lea.sflag [#allocation4], %s459
        %s461 = sand.u32 %s134, 1
        %s462 = smul.addr %s461, 2
        %s463 = scalar_lea.vmem [#allocation5], %s462
        // Predicated region
        $region41: #{tpu_custom_call.1} parent=35 // pred_check
          %p464 = pneg %p144
        $region42: #{tpu_custom_call.1} parent=35 // pred_check_branch
          %466 = sbr.rel (%p464) target = $region44
        $region43: #{tpu_custom_call.1} parent=35 // pred_region
          %s467 = smul.u32 2, %s26
          %469 = vsyncadd %s460, 0
          %s470 = smul.addr %s25, 2
          %s471 = sadd.s32 %s467, %s470
          %s472 = scalar_lea.hbm %s4, %s471
          %s474 = sshll.u32 %s463, 4
          %s475 = int_to_ptr.vmem [resolvable:$true] %s474
          %s476 = sshll.u32 %s472, 4
          %s477 = int_to_ptr.hbm [resolvable:$true] %s476
          %479 = dma.vmem_to_hbm [thread:$0]  %s475, 32, %s477, %s460
        $region44: #{tpu_custom_call.1} parent=35 // pred_fallthru
          _
      $region36: #{tpu_custom_call.1} parent=5 // pred_fallthru
        _
      %p480 = scmp.le.s32.totalorder 2, %s16
      // Predicated region
      $region45: #{tpu_custom_call.1} parent=5 // pred_check
        %p481 = pneg %p480
      $region46: #{tpu_custom_call.1} parent=5 // pred_check_branch
        %483 = sbr.rel (%p481) target = $region48
      $region47: #{tpu_custom_call.1} parent=5 // pred_region
        %s484 = ssub.s32 %s16, 2
        // Predicated region
        $region49: #{tpu_custom_call.1} parent=47 // pred_check
          %p485 = pneg %p150
        $region50: #{tpu_custom_call.1} parent=47 // pred_check_branch
          %487 = sbr.rel (%p485) target = $region52
        $region51: #{tpu_custom_call.1} parent=47 // pred_region
          %s488 = sand.u32 %s135, 1
          %s489 = scalar_lea.sflag [#allocation4], %s488
          %s490 = sand.u32 %s135, 1
          %s491 = smul.addr %s490, 2
          %s492 = scalar_lea.vmem [#allocation5], %s491
          %494 = dma.done %s489, 32
        $region52: #{tpu_custom_call.1} parent=47 // pred_fallthru
          _
      $region48: #{tpu_custom_call.1} parent=5 // pred_fallthru
        _
    $region6: #{tpu_custom_call.1} parent=1 // loop_footer
      %s20 = sadd.s32 1, %s16
    $region7: #{tpu_custom_call.1} parent=1 // loop_footer_branch
      %15 = sbr.rel target = $region3
    $region8: #{tpu_custom_call.1} parent=1 // loop_exit
      _
    %495 = vsyncpa [#allocation3], 1
    %s496 = scalar_lea.sflag [#allocation3], 1
    %497 = vsyncpa %s496, 1
    %498 = vsyncpa [#allocation4], 1
    %s499 = scalar_lea.sflag [#allocation4], 1
    %500 = vsyncpa %s499, 1

</llo_original>
